<compile_context>
chip_gen: v6e
topology: v6e:2x2x1
jax: 0.10.0
libtpu: 0.0.40
codegen_flags: <defaults>
</compile_context>

<pallas_src>
import jax
import jax.numpy as jnp
from jax.experimental import pallas as pl
from jax.experimental.pallas import tpu as pltpu


# ----------------------------------------------------------------------------
# Pallas kernel: one lane-dense (block_rows, cols) tile
# ----------------------------------------------------------------------------

def weighted_connect_kernel(w_ref, x_ref, o_ref):
    o_ref[...] = w_ref[...] + x_ref[...]


# ----------------------------------------------------------------------------
# Wrapper
# ----------------------------------------------------------------------------

def _round_up(a, b):
    return ((a + b - 1) // b) * b


def weighted_connect(weighted, x, *, max_block_bytes=4 << 20,
                     small_n_threshold=1 << 16, force_kernel=False,
                     donate_weighted=False):
    """Elementwise `weighted + x` for arbitrary (identical) shapes."""
    assert weighted.shape == x.shape, "WeightedConnect requires matching shapes"
    out_dtype = jnp.promote_types(weighted.dtype, x.dtype)  # PyTorch-style promotion
    orig_shape = weighted.shape
    n = int(weighted.size)

    # Tiny tensors: XLA's fused add beats any kernel-launch overhead.
    if n == 0 or ((not force_kernel) and n < small_n_threshold):
        return weighted.astype(out_dtype) + x.astype(out_dtype)

    w = weighted.astype(out_dtype)
    xx = x.astype(out_dtype)
    itemsize = jnp.dtype(out_dtype).itemsize
    sublane = max(8, 32 // itemsize)  # 8 (f32), 16 (bf16), 32 (int8/fp8)

    # --- Layout: lane-dense (rows, cols) slab, no-copy when cols divides n ---
    cols = next((c for c in (4096, 2048, 1024, 512, 256, 128) if n % c == 0),
                None)
    padded = cols is None
    if padded:
        # Rare ragged fallback (n not a multiple of 128): one pad + one slice.
        cols = 512 if n < (1 << 20) else 1024
        rows = pl.cdiv(n, cols)
        pad = rows * cols - n
        a2d = jnp.pad(w.reshape(-1), (0, pad)).reshape(rows, cols)
        b2d = jnp.pad(xx.reshape(-1), (0, pad)).reshape(rows, cols)
    else:
        rows = n // cols
        a2d = w.reshape(rows, cols)
        b2d = xx.reshape(rows, cols)

    # --- Tiling: balanced blocks, >=2 blocks when possible (v7x megacore) ---
    target_block_rows = max(sublane, max_block_bytes // (cols * itemsize))
    nblocks = max(pl.cdiv(rows, target_block_rows),
                  2 if rows >= 2 * sublane else 1)
    block_rows = min(rows, _round_up(pl.cdiv(rows, nblocks), sublane))
    grid = (pl.cdiv(rows, block_rows),)

    blk = pl.BlockSpec((block_rows, cols), lambda i: (i, 0))

    # 3 operands x 2 pipeline buffers per block, plus headroom; stays under
    # v7x's 64 MiB physical VMEM and above v5e's 16 MiB default scoped limit.
    block_bytes = block_rows * cols * itemsize
    vmem_limit = min(max(6 * block_bytes + (2 << 20), 32 << 20), 48 << 20)

    extra = {}
    if donate_weighted:
        extra["input_output_aliases"] = {0: 0}

    out2d = pl.pallas_call(
        weighted_connect_kernel,
        out_shape=jax.ShapeDtypeStruct((rows, cols), out_dtype),
        grid=grid,
        in_specs=[blk, blk],
        out_specs=blk,
        compiler_params=pltpu.CompilerParams(
            dimension_semantics=("parallel",),
            vmem_limit_bytes=vmem_limit),
        **extra,
    )(a2d, b2d)

    if padded:
        return out2d.reshape(-1)[:n].reshape(orig_shape)
    return out2d.reshape(orig_shape)


# ----------------------------------------------------------------------------

if __name__ == "__main__":
    key = jax.random.PRNGKey(0)
    k1, k2, k3, k4, k5, k6 = jax.random.split(key, 6)

    # 1) Module-implied demo shape: channels=4, height=16, width=16, batch=2.
    #    force_kernel=True so the Pallas kernel runs on the spec shape even
    #    though the small-input fast path would normally handle it in XLA.
    B, C, H, W = 2, 4, 16, 16
    w_small = jax.random.normal(k1, (B, C, H, W), jnp.float32)
    x_small = jax.random.normal(k2, (B, C, H, W), jnp.float32)
    out_small = jax.block_until_ready(
        weighted_connect(w_small, x_small, force_kernel=True))
    assert out_small.shape == (B, C, H, W)
    assert jnp.allclose(out_small, w_small + x_small, atol=1e-6, rtol=1e-6)

    # 2) Larger 128-divisible shape: no-copy layout, multi-block grid
    #    (>= 2 blocks -> both v7x TensorCores active).
    w_big = jax.random.normal(k3, (4, 8, 32, 128), jnp.float32)
    x_big = jax.random.normal(k4, (4, 8, 32, 128), jnp.float32)
    out_big = jax.block_until_ready(weighted_connect(w_big, x_big))
    assert jnp.allclose(out_big, w_big + x_big, atol=1e-6, rtol=1e-6)

    # 3) Ragged shape: exercises the padded fallback path.
    w_rag = jax.random.normal(k5, (3, 5, 7, 11), jnp.float32)
    x_rag = jax.random.normal(k6, (3, 5, 7, 11), jnp.float32)
    out_rag = jax.block_until_ready(
        weighted_connect(w_rag, x_rag, force_kernel=True))
    assert jnp.allclose(out_rag, w_rag + x_rag, atol=1e-6, rtol=1e-6)

    print("KERNEL_OK")
</pallas_src>

<mosaic_0001>
module attributes {stable_mosaic.version = 11 : i64} {
  func.func @weighted_connect_kernel(%arg0: i32, %arg1: memref<1x2048xf32, #tpu.memory_space<vmem>>, %arg2: memref<1x2048xf32, #tpu.memory_space<vmem>>, %arg3: memref<1x2048xf32, #tpu.memory_space<vmem>>) attributes {dimension_semantics = [#tpu.dimension_semantics<parallel>], iteration_bounds = array<i64: 1>, scalar_prefetch = 0 : i64, scratch_operands = 0 : i64, tpu.core_type = #tpu.core_type<tc>, window_params = [{transform_indices = @transform_0, window_bounds = array<i64: 1, 2048>}, {transform_indices = @transform_1, window_bounds = array<i64: 1, 2048>}, {transform_indices = @transform_2, window_bounds = array<i64: 1, 2048>}]} {
    %c0 = arith.constant 0 : index
    %c0_0 = arith.constant 0 : index
    %0 = vector.load %arg1[%c0, %c0_0] : memref<1x2048xf32, #tpu.memory_space<vmem>>, vector<1x2048xf32>
    %c0_1 = arith.constant 0 : index
    %c0_2 = arith.constant 0 : index
    %1 = vector.load %arg2[%c0_1, %c0_2] : memref<1x2048xf32, #tpu.memory_space<vmem>>, vector<1x2048xf32>
    %2 = arith.addf %0, %1 : vector<1x2048xf32>
    %c0_3 = arith.constant 0 : index
    %c0_4 = arith.constant 0 : index
    %3 = vector.load %arg3[%c0_3, %c0_4] : memref<1x2048xf32, #tpu.memory_space<vmem>>, vector<1x2048xf32>
    tpu.vector_store %arg3[%c0_3, %c0_4], %2 {strides = array<i32>} : memref<1x2048xf32, #tpu.memory_space<vmem>>, vector<1x2048xf32>,
    return
  }
  func.func @transform_0(%arg0: i32) -> (i32, i32) {
    %c0_i32 = arith.constant 0 : i32
    %c0_i32_0 = arith.constant 0 : i32
    return %arg0, %c0_i32 : i32, i32
  }
  func.func @transform_1(%arg0: i32) -> (i32, i32) {
    %c0_i32 = arith.constant 0 : i32
    %c0_i32_0 = arith.constant 0 : i32
    return %arg0, %c0_i32 : i32, i32
  }
  func.func @transform_2(%arg0: i32) -> (i32, i32) {
    %c0_i32 = arith.constant 0 : i32
    %c0_i32_0 = arith.constant 0 : i32
    return %arg0, %c0_i32 : i32, i32
  }
}

</mosaic_0001>

<llo_original>
// kernel: tpu_custom_call.1
$region0: #{tpu_custom_call.1}
  #allocation0 [shape = 'u32[]', space=smem, size = 0x4, offset = 0x4, fixed_abs, tag = 'smem constant byte address 0x4 - core index']
  #allocation1 [shape = 'u32[144,128]{1,0:T(1,128)}', space=vmem, size = 0x12000, scoped, tag = 'internal scratch']
  %s0 = inlined_call_operand.hbm [shape: f32[1,2048], index: 0, kind: input, shape index: {}]
  %s1 = inlined_call_operand.hbm [shape: f32[1,2048], index: 1, kind: input, shape index: {}]
  %s2 = inlined_call_operand.hbm [shape: f32[1,2048], index: 2, kind: output, shape index: {}]
  %s3 = sld [smem:[#allocation0]]
  $region26: #{tpu_custom_call.1} parent=0
    _
  %s5 = ssub.s32 1, %s3
  %s6 = scalar_select 0, %s5, %s3
  $region1: #{tpu_custom_call.1} parent=0
    #allocation2 [shape = 'u8[8192]{0}', space=vmem, size = 0x2000, scoped, tag = 'input window, operand 0, single buffered']
    #allocation3 [shape = 's32[1]{0}', space=sflag, size = 0x4, scoped, tag = 'scoped memory for tpu_custom_call.1']
    #allocation4 [shape = 's32[1]{0}', space=sflag, size = 0x4, scoped, tag = 'scoped memory for tpu_custom_call.1']
    #allocation5 [shape = 'u8[8192]{0}', space=vmem, size = 0x2000, scoped, tag = 'input window, operand 1, single buffered']
    #allocation6 [shape = 's32[1]{0}', space=sflag, size = 0x4, scoped, tag = 'scoped memory for tpu_custom_call.1']
    #allocation7 [shape = 'u8[8192]{0}', space=vmem, size = 0x2000, scoped, tag = 'output window, operand 0, single buffered']
    %7 = vsyncpa [#allocation3], 0
    %8 = vsyncpa [#allocation6], 0
    %9 = vsyncpa [#allocation4], 0
    // Predicated region
    $region2: #{tpu_custom_call.1} parent=1 // pred_check
      _
    $region3: #{tpu_custom_call.1} parent=1 // pred_check_branch
      %11 = sbr.rel (0) target = $region5
    $region4: #{tpu_custom_call.1} parent=1 // pred_region
      %s13 = ssub.s32 256, 256
      %14 = vsyncadd [#allocation3], %s13
      %s16 = sshll.u32 [#allocation2], 4
      %s17 = int_to_ptr.vmem [resolvable:$true] %s16
      %19 = dma.hbm_to_vmem [thread:$0]  %s0, 256, %s17, [#allocation3]
    $region5: #{tpu_custom_call.1} parent=1 // pred_fallthru
      _
    // Predicated region
    $region6: #{tpu_custom_call.1} parent=1 // pred_check
      _
    $region7: #{tpu_custom_call.1} parent=1 // pred_check_branch
      %21 = sbr.rel (0) target = $region9
    $region8: #{tpu_custom_call.1} parent=1 // pred_region
      %s23 = ssub.s32 256, 256
      %24 = vsyncadd [#allocation6], %s23
      %s26 = sshll.u32 [#allocation5], 4
      %s27 = int_to_ptr.vmem [resolvable:$true] %s26
      %29 = dma.hbm_to_vmem [thread:$0]  %s1, 256, %s27, [#allocation6]
    $region9: #{tpu_custom_call.1} parent=1 // pred_fallthru
      _
    // Predicated region
    $region10: #{tpu_custom_call.1} parent=1 // pred_check
      _
    $region11: #{tpu_custom_call.1} parent=1 // pred_check_branch
      %31 = sbr.rel (0) target = $region13
    $region12: #{tpu_custom_call.1} parent=1 // pred_region
      %32 = dma.done [#allocation3], 256
    $region13: #{tpu_custom_call.1} parent=1 // pred_fallthru
      _
    // Predicated region
    $region14: #{tpu_custom_call.1} parent=1 // pred_check
      _
    $region15: #{tpu_custom_call.1} parent=1 // pred_check_branch
      %34 = sbr.rel (0) target = $region17
    $region16: #{tpu_custom_call.1} parent=1 // pred_region
      %35 = dma.done [#allocation6], 256
    $region17: #{tpu_custom_call.1} parent=1 // pred_fallthru
      _
    %v36 = vld [vmem:[#allocation2] sm:$0xff]
    %v37 = vld [vmem:[#allocation2 + $0x8] sm:$0xff]
    %v38 = vld [vmem:[#allocation5] sm:$0xff]
    %v39 = vld [vmem:[#allocation5 + $0x8] sm:$0xff]
    %v40 = vadd.f32 %v36, %v38
    %v41 = vadd.f32 %v37, %v39
    %42 = vst [vmem:[#allocation7] sm:$0xff] %v40
    %43 = vst [vmem:[#allocation7 + $0x8] sm:$0xff] %v41
    // Predicated region
    $region18: #{tpu_custom_call.1} parent=1 // pred_check
      _
    $region19: #{tpu_custom_call.1} parent=1 // pred_check_branch
      %45 = sbr.rel (0) target = $region21
    $region20: #{tpu_custom_call.1} parent=1 // pred_region
      %s47 = ssub.s32 256, 256
      %48 = vsyncadd [#allocation4], %s47
      %s50 = sshll.u32 [#allocation7], 4
      %s51 = int_to_ptr.vmem [resolvable:$true] %s50
      %53 = dma.vmem_to_hbm [thread:$0]  %s51, 256, %s2, [#allocation4]
    $region21: #{tpu_custom_call.1} parent=1 // pred_fallthru
      _
    // Predicated region
    $region22: #{tpu_custom_call.1} parent=1 // pred_check
      _
    $region23: #{tpu_custom_call.1} parent=1 // pred_check_branch
      %55 = sbr.rel (0) target = $region25
    $region24: #{tpu_custom_call.1} parent=1 // pred_region
      %56 = dma.done [#allocation4], 256
    $region25: #{tpu_custom_call.1} parent=1 // pred_fallthru
      _
    %57 = vsyncpa [#allocation3], 1
    %58 = vsyncpa [#allocation6], 1
    %59 = vsyncpa [#allocation4], 1

</llo_original>
